<compile_context>
chip_gen: v7x
topology: tpu7x:2x2x1
jax: 0.10.0
libtpu: 0.0.40
codegen_flags: <defaults>
</compile_context>

<pallas_src>
import functools

import jax
import jax.numpy as jnp
from jax.experimental import pallas as pl
from jax.experimental.pallas import tpu as pltpu

LANE = 128
SUB = 8


def _round_up(x, m):
    return -(-x // m) * m


# ----------------------------- kernels ------------------------------------ #


def _resblock_resident_kernel(x_ref, w1_ref, b1_ref, w2_ref, b2_ref, o_ref):
    """Both (Fp, Fp) weights VMEM-resident; batch streamed on a 1-D grid."""
    x = x_ref[...]                                   # (tm, Fp), f32
    cdt = w1_ref.dtype                               # MXU compute dtype

    h = jnp.maximum(x, 0.0).astype(cdt)
    h = jnp.dot(h, w1_ref[...], preferred_element_type=jnp.float32) + b1_ref[...]
    h = jnp.maximum(h, 0.0).astype(cdt)
    h = jnp.dot(h, w2_ref[...], preferred_element_type=jnp.float32) + b2_ref[...]

    o_ref[...] = (x.astype(jnp.float32) + h).astype(o_ref.dtype)


def _resblock_ktiled_kernel(x_ref, w1_ref, b1_ref, w2_ref, b2_ref, o_ref, acc_ref):
    """Feature-tiled variant for large F: grid = (batch_tiles, k_tiles).

    Per k step: compute a (tm, tk) column tile of the hidden activation and
    accumulate its contribution to the (tm, Fp) output in an f32 scratch.
    """
    k = pl.program_id(1)

    @pl.when(k == 0)
    def _():
        acc_ref[...] = jnp.zeros_like(acc_ref)

    x = x_ref[...]                                   # (tm, Fp)
    cdt = w1_ref.dtype

    h = jnp.maximum(x, 0.0).astype(cdt)
    # (tm, Fp) @ (Fp, tk) -> hidden column tile k
    h = jnp.dot(h, w1_ref[...], preferred_element_type=jnp.float32) + b1_ref[...]
    h = jnp.maximum(h, 0.0).astype(cdt)
    # (tm, tk) @ (tk, Fp) -> partial output, accumulate over k
    acc_ref[...] += jnp.dot(h, w2_ref[...], preferred_element_type=jnp.float32)

    @pl.when(k == pl.num_programs(1) - 1)
    def _():
        o_ref[...] = (x.astype(jnp.float32) + acc_ref[...] + b2_ref[...]).astype(o_ref.dtype)


# ----------------------------- wrappers ------------------------------------ #


def prepare_resblock_params(w1, b1, w2, b2, *, compute_dtype=jnp.float32):
    """One-time parameter prep (hoist out of MAML inner loops).

    Pads the feature axis to a lane multiple, transposes torch (out, in)
    weights to (in, out) so the kernel runs a native (M,K)@(K,N) contraction,
    and casts weights to the MXU compute dtype (f32 or bf16 on any generation).
    Biases stay f32.
    """
    F = w1.shape[1]
    assert w1.shape == (F, F) and w2.shape == (F, F), "residual needs in == out"
    assert b1.shape == (F,) and b2.shape == (F,)
    Fp = _round_up(F, LANE)
    cdt = jnp.dtype(compute_dtype)
    w1t = jnp.zeros((Fp, Fp), cdt).at[:F, :F].set(w1.T.astype(cdt))
    w2t = jnp.zeros((Fp, Fp), cdt).at[:F, :F].set(w2.T.astype(cdt))
    b1p = jnp.zeros((1, Fp), jnp.float32).at[0, :F].set(b1.astype(jnp.float32))
    b2p = jnp.zeros((1, Fp), jnp.float32).at[0, :F].set(b2.astype(jnp.float32))
    return {"F": F, "w1t": w1t, "b1": b1p, "w2t": w2t, "b2": b2p}


def _vmem_budget_bytes():
    """Usable VMEM for this kernel, per generation, with compiler headroom."""
    try:
        cap = int(pltpu.get_tpu_info().vmem_capacity_bytes)
    except Exception:
        cap = 64 << 20          # conservative fallback (v7x per-TC VMEM)
    return (cap * 7) // 8       # ~112 MiB on v5e/v6e, ~56 MiB on v7x


def _pick_tm(B):
    bp8 = _round_up(B, SUB)
    if bp8 <= 512:
        return bp8
    for cand in (512, 448, 384, 320, 256, 192, 128):
        if bp8 % cand == 0:
            return cand
    return 256


def resblock_apply(x, params, *, tm=None, tk=LANE, force_feature_tiling=False):
    """Apply a prepared ResBlock to x of shape (B, F)."""
    B, F = x.shape
    assert F == params["F"], "x feature size must match prepared params"
    w1t, b1, w2t, b2 = params["w1t"], params["b1"], params["w2t"], params["b2"]
    Fp = w1t.shape[0]
    cbytes = w1t.dtype.itemsize
    xbytes = x.dtype.itemsize

    if tm is None:
        tm = _pick_tm(B)
    else:
        tm = max(SUB, min(_round_up(tm, SUB), _round_up(B, SUB)))
    tk = min(Fp, _round_up(tk, LANE))
    if Fp % tk != 0:
        tk = LANE

    budget = _vmem_budget_bytes()
    headroom = 2 << 20

    def resident_bytes(tm_):
        return (2 * Fp * Fp * cbytes            # two weights, single-buffered
                + 2 * Fp * 4                    # two biases, single-buffered
                + 2 * 2 * tm_ * Fp * xbytes)    # double-buffered x / out tiles

    def ktiled_bytes(tm_, tk_):
        return (2 * 2 * Fp * tk_ * cbytes       # double-buffered W1 col / W2 row tiles
                + 2 * 2 * tk_ * 4 + Fp * 4      # b1 tiles + resident b2
                + 2 * 2 * tm_ * Fp * xbytes     # double-buffered x / out tiles
                + tm_ * Fp * 4)                 # f32 accumulator scratch

    use_ktiled = force_feature_tiling or (resident_bytes(tm) + headroom > budget)
    if use_ktiled:
        while ktiled_bytes(tm, tk) + headroom > budget and tm > SUB:
            tm = max(SUB, (tm // 2) // SUB * SUB)

    Bp = _round_up(B, tm)
    need_pad = (Bp != B) or (Fp != F)
    xp = x if not need_pad else jnp.zeros((Bp, Fp), x.dtype).at[:B, :F].set(x)

    single = pl.Buffered(buffer_count=1)        # grid-invariant operands

    if not use_ktiled:
        est = resident_bytes(tm)
        out = pl.pallas_call(
            _resblock_resident_kernel,
            out_shape=jax.ShapeDtypeStruct((Bp, Fp), x.dtype),
            grid=(Bp // tm,),
            in_specs=[
                pl.BlockSpec((tm, Fp), lambda i: (i, 0)),                          # x: streamed
                pl.BlockSpec((Fp, Fp), lambda i: (0, 0), pipeline_mode=single),    # w1 (K, N)
                pl.BlockSpec((1, Fp), lambda i: (0, 0), pipeline_mode=single),     # b1
                pl.BlockSpec((Fp, Fp), lambda i: (0, 0), pipeline_mode=single),    # w2 (K, N)
                pl.BlockSpec((1, Fp), lambda i: (0, 0), pipeline_mode=single),     # b2
            ],
            out_specs=pl.BlockSpec((tm, Fp), lambda i: (i, 0)),
            compiler_params=pltpu.CompilerParams(
                dimension_semantics=("parallel",),
                vmem_limit_bytes=int(min(budget, max(est + headroom, 32 << 20))),
            ),
        )(xp, w1t, b1, w2t, b2)
    else:
        est = ktiled_bytes(tm, tk)
        out = pl.pallas_call(
            _resblock_ktiled_kernel,
            out_shape=jax.ShapeDtypeStruct((Bp, Fp), x.dtype),
            grid=(Bp // tm, Fp // tk),
            in_specs=[
                pl.BlockSpec((tm, Fp), lambda i, k: (i, 0)),                       # x: resident per i
                pl.BlockSpec((Fp, tk), lambda i, k: (0, k)),                       # w1 column tile
                pl.BlockSpec((1, tk), lambda i, k: (0, k)),                        # b1 tile
                pl.BlockSpec((tk, Fp), lambda i, k: (k, 0)),                       # w2 row tile
                pl.BlockSpec((1, Fp), lambda i, k: (0, 0), pipeline_mode=single),  # b2
            ],
            out_specs=pl.BlockSpec((tm, Fp), lambda i, k: (i, 0)),
            scratch_shapes=[pltpu.VMEM((tm, Fp), jnp.float32)],
            compiler_params=pltpu.CompilerParams(
                dimension_semantics=("parallel", "arbitrary"),
                vmem_limit_bytes=int(min(budget, max(est + headroom, 32 << 20))),
            ),
        )(xp, w1t, b1, w2t, b2)

    return out if not need_pad else out[:B, :F]


def resblock(x, w1, b1, w2, b2, *, compute_dtype=jnp.float32, tm=None,
             force_feature_tiling=False):
    """Convenience one-shot wrapper (prep + apply). For hot loops, call
    prepare_resblock_params() once and reuse resblock_apply()."""
    params = prepare_resblock_params(w1, b1, w2, b2, compute_dtype=compute_dtype)
    return resblock_apply(x, params, tm=tm, force_feature_tiling=force_feature_tiling)


def resblock_ref(x, w1, b1, w2, b2):
    h = jnp.maximum(x, 0.0)
    h = h @ w1.T + b1
    h = jnp.maximum(h, 0.0)
    h = h @ w2.T + b2
    return x + h


if __name__ == "__main__":
    def make_inputs(key, B, F):
        kx, k1, k2, k3, k4 = jax.random.split(key, 5)
        bound = 1.0 / (F ** 0.5)  # torch.nn.Linear default init range
        x = jax.random.normal(kx, (B, F), dtype=jnp.float32)
        w1 = jax.random.uniform(k1, (F, F), minval=-bound, maxval=bound, dtype=jnp.float32)
        b1 = jax.random.uniform(k2, (F,), minval=-bound, maxval=bound, dtype=jnp.float32)
        w2 = jax.random.uniform(k3, (F, F), minval=-bound, maxval=bound, dtype=jnp.float32)
        b2 = jax.random.uniform(k4, (F,), minval=-bound, maxval=bound, dtype=jnp.float32)
        return x, w1, b1, w2, b2

    k_small, k_mid, k_big = jax.random.split(jax.random.PRNGKey(0), 3)

    # 1) Module-sized case (in_size == out_size == 32), f32; params prepared
    #    once and reused (hoisted out of the "inner loop").
    x, w1, b1, w2, b2 = make_inputs(k_small, 8, 32)
    params_f32 = prepare_resblock_params(w1, b1, w2, b2)
    out = jax.block_until_ready(resblock_apply(x, params_f32))
    ref = resblock_ref(x, w1, b1, w2, b2)
    assert out.shape == (8, 32)
    assert jnp.allclose(out, ref, atol=1e-5, rtol=1e-5), "f32 mismatch vs reference"

    # 2) bf16 MXU path (valid on v5e/v6e/v7x); accumulation/bias/residual stay f32.
    params_bf16 = prepare_resblock_params(w1, b1, w2, b2, compute_dtype=jnp.bfloat16)
    out_bf16 = jax.block_until_ready(resblock_apply(x, params_bf16))
    assert jnp.allclose(out_bf16, ref, atol=5e-2, rtol=5e-2), "bf16 mismatch vs reference"

    # 3) Multi-batch-tile, fully aligned case (no padding, no output slice).
    x2, w12, b12, w22, b22 = make_inputs(k_mid, 768, 128)
    out2 = jax.block_until_ready(resblock(x2, w12, b12, w22, b22))
    ref2 = resblock_ref(x2, w12, b12, w22, b22)
    assert jnp.allclose(out2, ref2, atol=1e-4, rtol=1e-4), "multi-tile mismatch"

    # 4) Feature-tiled (K-accumulator) path, forced so it is exercised at small
    #    shapes (2 k-tiles); this is the path used on v7x when F is large.
    x3, w13, b13, w23, b23 = make_inputs(k_big, 64, 256)
    out3 = jax.block_until_ready(
        resblock(x3, w13, b13, w23, b23, force_feature_tiling=True))
    ref3 = resblock_ref(x3, w13, b13, w23, b23)
    assert jnp.allclose(out3, ref3, atol=1e-4, rtol=1e-4), "feature-tiled mismatch"

    print("KERNEL_OK")
</pallas_src>

<mosaic_0001>
module attributes {stable_mosaic.version = 11 : i64} {
  func.func @_resblock_resident_kernel(%arg0: i32, %arg1: memref<8x128xf32, #tpu.memory_space<vmem>>, %arg2: memref<128x128xf32, #tpu.memory_space<vmem>>, %arg3: memref<1x128xf32, #tpu.memory_space<vmem>>, %arg4: memref<128x128xf32, #tpu.memory_space<vmem>>, %arg5: memref<1x128xf32, #tpu.memory_space<vmem>>, %arg6: memref<8x128xf32, #tpu.memory_space<vmem>>) attributes {dimension_semantics = [#tpu.dimension_semantics<parallel>], iteration_bounds = array<i64: 1>, scalar_prefetch = 0 : i64, scratch_operands = 0 : i64, tpu.core_type = #tpu.core_type<tc>, window_params = [{transform_indices = @transform_0, window_bounds = array<i64: 8, 128>}, {pipeline_mode = #tpu.pipeline_mode<synchronous>, transform_indices = @transform_1, window_bounds = array<i64: 128, 128>}, {pipeline_mode = #tpu.pipeline_mode<synchronous>, transform_indices = @transform_2, window_bounds = array<i64: 1, 128>}, {pipeline_mode = #tpu.pipeline_mode<synchronous>, transform_indices = @transform_3, window_bounds = array<i64: 128, 128>}, {pipeline_mode = #tpu.pipeline_mode<synchronous>, transform_indices = @transform_4, window_bounds = array<i64: 1, 128>}, {transform_indices = @transform_5, window_bounds = array<i64: 8, 128>}]} {
    %c0 = arith.constant 0 : index
    %c0_0 = arith.constant 0 : index
    %0 = vector.load %arg1[%c0, %c0_0] : memref<8x128xf32, #tpu.memory_space<vmem>>, vector<8x128xf32>
    %cst = arith.constant 0.000000e+00 : f32
    %1 = vector.broadcast %cst : f32 to vector<8x128xf32>
    %2 = arith.maximumf %0, %1 : vector<8x128xf32>
    %c0_1 = arith.constant 0 : index
    %c0_2 = arith.constant 0 : index
    %3 = vector.load %arg2[%c0_1, %c0_2] : memref<128x128xf32, #tpu.memory_space<vmem>>, vector<128x128xf32>
    %cst_3 = arith.constant dense<0.000000e+00> : vector<8x128xf32>
    %4 = tpu.matmul %2, %3, %cst_3 {dimension_numbers = #tpu.dot_dimension_numbers<[1], [0], [0], [1], [0, 0, 1, 1], [], []>} : vector<8x128xf32>, vector<128x128xf32>, vector<8x128xf32> -> vector<8x128xf32>
    %c0_4 = arith.constant 0 : index
    %c0_5 = arith.constant 0 : index
    %5 = vector.load %arg3[%c0_4, %c0_5] : memref<1x128xf32, #tpu.memory_space<vmem>>, vector<1x128xf32>
    %6 = vector.broadcast %5 : vector<1x128xf32> to vector<8x128xf32>
    %7 = arith.addf %4, %6 : vector<8x128xf32>
    %cst_6 = arith.constant 0.000000e+00 : f32
    %8 = vector.broadcast %cst_6 : f32 to vector<8x128xf32>
    %9 = arith.maximumf %7, %8 : vector<8x128xf32>
    %c0_7 = arith.constant 0 : index
    %c0_8 = arith.constant 0 : index
    %10 = vector.load %arg4[%c0_7, %c0_8] : memref<128x128xf32, #tpu.memory_space<vmem>>, vector<128x128xf32>
    %cst_9 = arith.constant dense<0.000000e+00> : vector<8x128xf32>
    %11 = tpu.matmul %9, %10, %cst_9 {dimension_numbers = #tpu.dot_dimension_numbers<[1], [0], [0], [1], [0, 0, 1, 1], [], []>} : vector<8x128xf32>, vector<128x128xf32>, vector<8x128xf32> -> vector<8x128xf32>
    %c0_10 = arith.constant 0 : index
    %c0_11 = arith.constant 0 : index
    %12 = vector.load %arg5[%c0_10, %c0_11] : memref<1x128xf32, #tpu.memory_space<vmem>>, vector<1x128xf32>
    %13 = vector.broadcast %12 : vector<1x128xf32> to vector<8x128xf32>
    %14 = arith.addf %11, %13 : vector<8x128xf32>
    %15 = arith.addf %0, %14 : vector<8x128xf32>
    %c0_12 = arith.constant 0 : index
    %c0_13 = arith.constant 0 : index
    %16 = vector.load %arg6[%c0_12, %c0_13] : memref<8x128xf32, #tpu.memory_space<vmem>>, vector<8x128xf32>
    tpu.vector_store %arg6[%c0_12, %c0_13], %15 {strides = array<i32>} : memref<8x128xf32, #tpu.memory_space<vmem>>, vector<8x128xf32>,
    return
  }
  func.func @transform_0(%arg0: i32) -> (i32, i32) {
    %c0_i32 = arith.constant 0 : i32
    %c0_i32_0 = arith.constant 0 : i32
    return %arg0, %c0_i32 : i32, i32
  }
  func.func @transform_1(%arg0: i32) -> (i32, i32) {
    %c0_i32 = arith.constant 0 : i32
    %c0_i32_0 = arith.constant 0 : i32
    %c0_i32_1 = arith.constant 0 : i32
    return %c0_i32, %c0_i32_0 : i32, i32
  }
  func.func @transform_2(%arg0: i32) -> (i32, i32) {
    %c0_i32 = arith.constant 0 : i32
    %c0_i32_0 = arith.constant 0 : i32
    %c0_i32_1 = arith.constant 0 : i32
    return %c0_i32, %c0_i32_0 : i32, i32
  }
  func.func @transform_3(%arg0: i32) -> (i32, i32) {
    %c0_i32 = arith.constant 0 : i32
    %c0_i32_0 = arith.constant 0 : i32
    %c0_i32_1 = arith.constant 0 : i32
    return %c0_i32, %c0_i32_0 : i32, i32
  }
  func.func @transform_4(%arg0: i32) -> (i32, i32) {
    %c0_i32 = arith.constant 0 : i32
    %c0_i32_0 = arith.constant 0 : i32
    %c0_i32_1 = arith.constant 0 : i32
    return %c0_i32, %c0_i32_0 : i32, i32
  }
  func.func @transform_5(%arg0: i32) -> (i32, i32) {
    %c0_i32 = arith.constant 0 : i32
    %c0_i32_0 = arith.constant 0 : i32
    return %arg0, %c0_i32 : i32, i32
  }
}

</mosaic_0001>

<llo_original>
// kernel: tpu_custom_call.1
$region0: #{tpu_custom_call.1}
  #allocation0 [shape = 'u32[]', space=smem, size = 0x4, offset = 0x4, fixed_abs, tag = 'smem constant byte address 0x4 - core index']
  #allocation1 [shape = 'u32[144,128]{1,0:T(1,128)}', space=vmem, size = 0x12000, scoped, tag = 'internal scratch']
  %s0 = inlined_call_operand.hbm [shape: f32[8,128], index: 0, kind: input, shape index: {}]
  %s1 = inlined_call_operand.hbm [shape: f32[128,128], index: 1, kind: input, shape index: {}]
  %s2 = inlined_call_operand.vmem [shape: f32[1,128], index: 2, kind: input, shape index: {}]
  %s3 = inlined_call_operand.hbm [shape: f32[128,128], index: 3, kind: input, shape index: {}]
  %s4 = inlined_call_operand.vmem [shape: f32[1,128], index: 4, kind: input, shape index: {}]
  %s5 = inlined_call_operand.hbm [shape: f32[8,128], index: 5, kind: output, shape index: {}]
  %s6 = sld [smem:[#allocation0]]
  $region42: #{tpu_custom_call.1} parent=0
    _
  %s8 = ssub.s32 1, %s6
  %s9 = scalar_select 0, %s8, %s6
  $region1: #{tpu_custom_call.1} parent=0
    #allocation2 [shape = 'u8[4096]{0}', space=vmem, size = 0x1000, scoped, tag = 'input window, operand 0, single buffered']
    #allocation3 [shape = 's32[1]{0}', space=sflag, size = 0x4, scoped, tag = 'scoped memory for tpu_custom_call.1']
    #allocation4 [shape = 's32[1]{0}', space=sflag, size = 0x4, scoped, tag = 'scoped memory for tpu_custom_call.1']
    #allocation5 [shape = 'u8[65536]{0}', space=vmem, size = 0x10000, scoped, tag = 'input window, operand 1, single buffered']
    #allocation6 [shape = 's32[1]{0}', space=sflag, size = 0x4, scoped, tag = 'scoped memory for tpu_custom_call.1']
    #allocation7 [shape = 'u8[65536]{0}', space=vmem, size = 0x10000, scoped, tag = 'input window, operand 3, single buffered']
    #allocation8 [shape = 'u8[4096]{0}', space=vmem, size = 0x1000, scoped, tag = 'output window, operand 0, single buffered']
    %10 = vsyncpa [#allocation3], 0
    %11 = vsyncpa [#allocation6], 0
    %12 = vsyncpa [#allocation4], 0
    // Predicated region
    $region2: #{tpu_custom_call.1} parent=1 // pred_check
      _
    $region3: #{tpu_custom_call.1} parent=1 // pred_check_branch
      %14 = sbr.rel (0) target = $region5
    $region4: #{tpu_custom_call.1} parent=1 // pred_region
      %s16 = ssub.s32 128, 128
      %17 = vsyncadd [#allocation3], %s16
      %s19 = sshll.u32 [#allocation2], 4
      %s20 = int_to_ptr.vmem [resolvable:$true] %s19
      %22 = dma.hbm_to_vmem [thread:$0]  %s0, 128, %s20, [#allocation3]
    $region5: #{tpu_custom_call.1} parent=1 // pred_fallthru
      _
    // Predicated region
    $region6: #{tpu_custom_call.1} parent=1 // pred_check
      _
    $region7: #{tpu_custom_call.1} parent=1 // pred_check_branch
      %24 = sbr.rel (0) target = $region9
    $region8: #{tpu_custom_call.1} parent=1 // pred_region
      %s26 = ssub.s32 2048, 2048
      %27 = vsyncadd [#allocation6], %s26
      %s28 = sshll.u32 [#allocation5], 4
      %s29 = int_to_ptr.vmem [resolvable:$true] %s28
      %34 = dma.hbm_to_vmem [thread:$0]  %s1, 2048, %s29, [#allocation6], 128, 128, 8
    $region9: #{tpu_custom_call.1} parent=1 // pred_fallthru
      _
    // Predicated region
    $region10: #{tpu_custom_call.1} parent=1 // pred_check
      _
    $region11: #{tpu_custom_call.1} parent=1 // pred_check_branch
      %36 = sbr.rel (0) target = $region13
    $region12: #{tpu_custom_call.1} parent=1 // pred_region
      _
    $region13: #{tpu_custom_call.1} parent=1 // pred_fallthru
      _
    // Predicated region
    $region14: #{tpu_custom_call.1} parent=1 // pred_check
      _
    $region15: #{tpu_custom_call.1} parent=1 // pred_check_branch
      %38 = sbr.rel (0) target = $region17
    $region16: #{tpu_custom_call.1} parent=1 // pred_region
      %s40 = ssub.s32 2048, 2048
      %41 = vsyncadd [#allocation6], %s40
      %s42 = sshll.u32 [#allocation7], 4
      %s43 = int_to_ptr.vmem [resolvable:$true] %s42
      %48 = dma.hbm_to_vmem [thread:$0]  %s3, 2048, %s43, [#allocation6], 128, 128, 8
    $region17: #{tpu_custom_call.1} parent=1 // pred_fallthru
      _
    // Predicated region
    $region18: #{tpu_custom_call.1} parent=1 // pred_check
      _
    $region19: #{tpu_custom_call.1} parent=1 // pred_check_branch
      %50 = sbr.rel (0) target = $region21
    $region20: #{tpu_custom_call.1} parent=1 // pred_region
      _
    $region21: #{tpu_custom_call.1} parent=1 // pred_fallthru
      _
    // Predicated region
    $region22: #{tpu_custom_call.1} parent=1 // pred_check
      _
    $region23: #{tpu_custom_call.1} parent=1 // pred_check_branch
      %52 = sbr.rel (0) target = $region25
    $region24: #{tpu_custom_call.1} parent=1 // pred_region
      %53 = dma.done [#allocation3], 128
    $region25: #{tpu_custom_call.1} parent=1 // pred_fallthru
      _
    // Predicated region
    $region26: #{tpu_custom_call.1} parent=1 // pred_check
      _
    $region27: #{tpu_custom_call.1} parent=1 // pred_check_branch
      %55 = sbr.rel (0) target = $region29
    $region28: #{tpu_custom_call.1} parent=1 // pred_region
      %56 = dma.done [#allocation6], 2048
    $region29: #{tpu_custom_call.1} parent=1 // pred_fallthru
      _
    // Predicated region
    $region30: #{tpu_custom_call.1} parent=1 // pred_check
      _
    $region31: #{tpu_custom_call.1} parent=1 // pred_check_branch
      %58 = sbr.rel (0) target = $region33
    $region32: #{tpu_custom_call.1} parent=1 // pred_region
      %59 = dma.done [#allocation6], 2048
    $region33: #{tpu_custom_call.1} parent=1 // pred_fallthru
      _
    %v60 = vld [vmem:[#allocation2] sm:$0xff]
    %v61 = vmax.f32 %v60, 0.0
    %v62 = vld [vmem:[#allocation5] sm:$0xff]
    %v63 = vld [vmem:[#allocation5 + $0x8] sm:$0xff]
    %v64 = vld [vmem:[#allocation5 + $0x10] sm:$0xff]
    %v65 = vld [vmem:[#allocation5 + $0x18] sm:$0xff]
    %v66 = vld [vmem:[#allocation5 + $0x20] sm:$0xff]
    %v67 = vld [vmem:[#allocation5 + $0x28] sm:$0xff]
    %v68 = vld [vmem:[#allocation5 + $0x30] sm:$0xff]
    %v69 = vld [vmem:[#allocation5 + $0x38] sm:$0xff]
    %v70 = vld [vmem:[#allocation5 + $0x40] sm:$0xff]
    %v71 = vld [vmem:[#allocation5 + $0x48] sm:$0xff]
    %v72 = vld [vmem:[#allocation5 + $0x50] sm:$0xff]
    %v73 = vld [vmem:[#allocation5 + $0x58] sm:$0xff]
    %v74 = vld [vmem:[#allocation5 + $0x60] sm:$0xff]
    %v75 = vld [vmem:[#allocation5 + $0x68] sm:$0xff]
    %v76 = vld [vmem:[#allocation5 + $0x70] sm:$0xff]
    %v77 = vld [vmem:[#allocation5 + $0x78] sm:$0xff]
    %v78 = vld [vmem:[%s2] sm:$0x1]
    %v80 = vlaneseq
    %v81 = vshrl.u32 %v80, 7
    %v82 = vsub.s32 0, %v81
    %v83 = vrot.slane %v78, %v82
    %85 = vmatprep.subr.mxu0 0.0
    %86 = vmatpush1.msra.mxu0 %v62
    %87 = vmatprep.subr.mxu0 0.0
    %88 = vmatpush1.msra.mxu0 %v63
    %89 = vmatprep.subr.mxu0 0.0
    %90 = vmatpush1.msra.mxu0 %v64
    %91 = vmatprep.subr.mxu0 0.0
    %92 = vmatpush1.msra.mxu0 %v65
    %93 = vmatprep.subr.mxu0 0.0
    %94 = vmatpush1.msra.mxu0 %v66
    %95 = vmatprep.subr.mxu0 0.0
    %96 = vmatpush1.msra.mxu0 %v67
    %97 = vmatprep.subr.mxu0 0.0
    %98 = vmatpush1.msra.mxu0 %v68
    %99 = vmatprep.subr.mxu0 0.0
    %100 = vmatpush1.msra.mxu0 %v69
    %101 = vmatprep.subr.mxu0 0.0
    %102 = vmatpush1.msra.mxu0 %v70
    %103 = vmatprep.subr.mxu0 0.0
    %104 = vmatpush1.msra.mxu0 %v71
    %105 = vmatprep.subr.mxu0 0.0
    %106 = vmatpush1.msra.mxu0 %v72
    %107 = vmatprep.subr.mxu0 0.0
    %108 = vmatpush1.msra.mxu0 %v73
    %109 = vmatprep.subr.mxu0 0.0
    %110 = vmatpush1.msra.mxu0 %v74
    %111 = vmatprep.subr.mxu0 0.0
    %112 = vmatpush1.msra.mxu0 %v75
    %113 = vmatprep.subr.mxu0 0.0
    %114 = vmatpush1.msra.mxu0 %v76
    %115 = vmatprep.subr.mxu0 0.0
    %116 = vmatpush1.msra.mxu0 %v77
    %117 = vmatprep.subr.mxu0 0.0
    %118 = vmatpush1.msra.mxu0 0.0
    %119 = vmatprep.subr.mxu0 0.0
    %120 = vmatpush1.msra.mxu0 0.0
    %121 = vmatprep.subr.mxu0 0.0
    %122 = vmatpush1.msra.mxu0 0.0
    %123 = vmatprep.subr.mxu0 0.0
    %124 = vmatpush1.msra.mxu0 0.0
    %125 = vmatprep.subr.mxu0 0.0
    %126 = vmatpush1.msra.mxu0 0.0
    %127 = vmatprep.subr.mxu0 0.0
    %128 = vmatpush1.msra.mxu0 0.0
    %129 = vmatprep.subr.mxu0 0.0
    %130 = vmatpush1.msra.mxu0 0.0
    %131 = vmatprep.subr.mxu0 0.0
    %132 = vmatpush1.msra.mxu0 0.0
    %133 = vmatprep.subr.mxu0 0.0
    %134 = vmatpush1.msra.mxu0 0.0
    %135 = vmatprep.subr.mxu0 0.0
    %136 = vmatpush1.msra.mxu0 0.0
    %137 = vmatprep.subr.mxu0 0.0
    %138 = vmatpush1.msra.mxu0 0.0
    %139 = vmatprep.subr.mxu0 0.0
    %140 = vmatpush1.msra.mxu0 0.0
    %141 = vmatprep.subr.mxu0 0.0
    %142 = vmatpush1.msra.mxu0 0.0
    %143 = vmatprep.subr.mxu0 0.0
    %144 = vmatpush1.msra.mxu0 0.0
    %145 = vmatprep.subr.mxu0 0.0
    %146 = vmatpush1.msra.mxu0 0.0
    %147 = vmatprep.subr.mxu0 0.0
    %148 = vmatpush1.msra.mxu0 0.0
    %149 = vmatprep.mubr.f32.mxu0 0.0
    %150 = vmatmul.mubr.f32.gmra.mrb[0].mxu0 %v61
    %v151 = vpop.f32.mrb[0].mxu0
    %v152 = vadd.f32 %v83, %v151
    %v153 = vpop.f32.mrb[0].mxu0
    %154 = vdwg.mxu0
    %v155 = vmax.f32 %v152, 0.0
    %v156 = vld [vmem:[#allocation7] sm:$0xff]
    %v157 = vld [vmem:[#allocation7 + $0x8] sm:$0xff]
    %v158 = vld [vmem:[#allocation7 + $0x10] sm:$0xff]
    %v159 = vld [vmem:[#allocation7 + $0x18] sm:$0xff]
    %v160 = vld [vmem:[#allocation7 + $0x20] sm:$0xff]
    %v161 = vld [vmem:[#allocation7 + $0x28] sm:$0xff]
    %v162 = vld [vmem:[#allocation7 + $0x30] sm:$0xff]
    %v163 = vld [vmem:[#allocation7 + $0x38] sm:$0xff]
    %v164 = vld [vmem:[#allocation7 + $0x40] sm:$0xff]
    %v165 = vld [vmem:[#allocation7 + $0x48] sm:$0xff]
    %v166 = vld [vmem:[#allocation7 + $0x50] sm:$0xff]
    %v167 = vld [vmem:[#allocation7 + $0x58] sm:$0xff]
    %v168 = vld [vmem:[#allocation7 + $0x60] sm:$0xff]
    %v169 = vld [vmem:[#allocation7 + $0x68] sm:$0xff]
    %v170 = vld [vmem:[#allocation7 + $0x70] sm:$0xff]
    %v171 = vld [vmem:[#allocation7 + $0x78] sm:$0xff]
    %v172 = vld [vmem:[%s4] sm:$0x1]
    %v174 = vlaneseq
    %v175 = vshrl.u32 %v174, 7
    %v176 = vsub.s32 0, %v175
    %v177 = vrot.slane %v172, %v176
    %179 = vmatprep.subr.mxu0 0.0
    %180 = vmatpush1.msra.mxu0 %v156
    %181 = vmatprep.subr.mxu0 0.0
    %182 = vmatpush1.msra.mxu0 %v157
    %183 = vmatprep.subr.mxu0 0.0
    %184 = vmatpush1.msra.mxu0 %v158
    %185 = vmatprep.subr.mxu0 0.0
    %186 = vmatpush1.msra.mxu0 %v159
    %187 = vmatprep.subr.mxu0 0.0
    %188 = vmatpush1.msra.mxu0 %v160
    %189 = vmatprep.subr.mxu0 0.0
    %190 = vmatpush1.msra.mxu0 %v161
    %191 = vmatprep.subr.mxu0 0.0
    %192 = vmatpush1.msra.mxu0 %v162
    %193 = vmatprep.subr.mxu0 0.0
    %194 = vmatpush1.msra.mxu0 %v163
    %195 = vmatprep.subr.mxu0 0.0
    %196 = vmatpush1.msra.mxu0 %v164
    %197 = vmatprep.subr.mxu0 0.0
    %198 = vmatpush1.msra.mxu0 %v165
    %199 = vmatprep.subr.mxu0 0.0
    %200 = vmatpush1.msra.mxu0 %v166
    %201 = vmatprep.subr.mxu0 0.0
    %202 = vmatpush1.msra.mxu0 %v167
    %203 = vmatprep.subr.mxu0 0.0
    %204 = vmatpush1.msra.mxu0 %v168
    %205 = vmatprep.subr.mxu0 0.0
    %206 = vmatpush1.msra.mxu0 %v169
    %207 = vmatprep.subr.mxu0 0.0
    %208 = vmatpush1.msra.mxu0 %v170
    %209 = vmatprep.subr.mxu0 0.0
    %210 = vmatpush1.msra.mxu0 %v171
    %211 = vmatprep.subr.mxu0 0.0
    %212 = vmatpush1.msra.mxu0 0.0
    %213 = vmatprep.subr.mxu0 0.0
    %214 = vmatpush1.msra.mxu0 0.0
    %215 = vmatprep.subr.mxu0 0.0
    %216 = vmatpush1.msra.mxu0 0.0
    %217 = vmatprep.subr.mxu0 0.0
    %218 = vmatpush1.msra.mxu0 0.0
    %219 = vmatprep.subr.mxu0 0.0
    %220 = vmatpush1.msra.mxu0 0.0
    %221 = vmatprep.subr.mxu0 0.0
    %222 = vmatpush1.msra.mxu0 0.0
    %223 = vmatprep.subr.mxu0 0.0
    %224 = vmatpush1.msra.mxu0 0.0
    %225 = vmatprep.subr.mxu0 0.0
    %226 = vmatpush1.msra.mxu0 0.0
    %227 = vmatprep.subr.mxu0 0.0
    %228 = vmatpush1.msra.mxu0 0.0
    %229 = vmatprep.subr.mxu0 0.0
    %230 = vmatpush1.msra.mxu0 0.0
    %231 = vmatprep.subr.mxu0 0.0
    %232 = vmatpush1.msra.mxu0 0.0
    %233 = vmatprep.subr.mxu0 0.0
    %234 = vmatpush1.msra.mxu0 0.0
    %235 = vmatprep.subr.mxu0 0.0
    %236 = vmatpush1.msra.mxu0 0.0
    %237 = vmatprep.subr.mxu0 0.0
    %238 = vmatpush1.msra.mxu0 0.0
    %239 = vmatprep.subr.mxu0 0.0
    %240 = vmatpush1.msra.mxu0 0.0
    %241 = vmatprep.subr.mxu0 0.0
    %242 = vmatpush1.msra.mxu0 0.0
    %243 = vmatprep.mubr.f32.mxu0 0.0
    %244 = vmatmul.mubr.f32.gmra.mrb[0].mxu0 %v155
    %v245 = vpop.f32.mrb[0].mxu0
    %v246 = vadd.f32 %v177, %v245
    %v247 = vpop.f32.mrb[0].mxu0
    %248 = vdwg.mxu0
    %v249 = vadd.f32 %v60, %v246
    %250 = vst [vmem:[#allocation8] sm:$0xff] %v249
    // Predicated region
    $region34: #{tpu_custom_call.1} parent=1 // pred_check
      _
    $region35: #{tpu_custom_call.1} parent=1 // pred_check_branch
      %252 = sbr.rel (0) target = $region37
    $region36: #{tpu_custom_call.1} parent=1 // pred_region
      %s254 = ssub.s32 128, 128
      %255 = vsyncadd [#allocation4], %s254
      %s257 = sshll.u32 [#allocation8], 4
      %s258 = int_to_ptr.vmem [resolvable:$true] %s257
      %260 = dma.vmem_to_hbm [thread:$0]  %s258, 128, %s5, [#allocation4]
    $region37: #{tpu_custom_call.1} parent=1 // pred_fallthru
      _
    // Predicated region
    $region38: #{tpu_custom_call.1} parent=1 // pred_check
      _
    $region39: #{tpu_custom_call.1} parent=1 // pred_check_branch
      %262 = sbr.rel (0) target = $region41
    $region40: #{tpu_custom_call.1} parent=1 // pred_region
      %263 = dma.done [#allocation4], 128
    $region41: #{tpu_custom_call.1} parent=1 // pred_fallthru
      _
    %264 = vsyncpa [#allocation3], 1
    %265 = vsyncpa [#allocation6], 1
    %266 = vsyncpa [#allocation4], 1

</llo_original>
